<compile_context>
chip_gen: v5e
topology: v5e:2x2
jax: 0.10.0
libtpu: 0.0.40
codegen_flags: <defaults>
</compile_context>

<pallas_src>
import functools

import jax
import jax.numpy as jnp
from jax.experimental import pallas as pl
from jax.experimental.pallas import tpu as pltpu


def _hat_mlp_kernel(x_ref, w1_ref, b1_ref, g1_ref,
                    w2_ref, b2_ref, g2_ref,
                    wl_ref, bl_ref,
                    y_ref):
    """One batch tile of the forward pass. Weights stay VMEM-resident."""
    # h = relu(x @ W1^T + b1) * gate1     (dropout = identity at inference)
    h = jnp.dot(x_ref[...], w1_ref[...], preferred_element_type=jnp.float32)
    h = jnp.maximum(h + b1_ref[...], 0.0) * g1_ref[...]

    # h = relu(h @ W2^T + b2) * gate2
    h = jnp.dot(h.astype(w2_ref.dtype), w2_ref[...],
                preferred_element_type=jnp.float32)
    h = jnp.maximum(h + b2_ref[...], 0.0) * g2_ref[...]

    # y = h @ Wlast^T + blast   (lane-dense: padded class dim, full vst)
    y_ref[...] = jnp.dot(h.astype(wl_ref.dtype), wl_ref[...],
                         preferred_element_type=jnp.float32) + bl_ref[...]


def hat_mlp_forward(params, t, x, s=1.0, *, tm=None, matmul_dtype=jnp.float32):
    """JAX wrapper reproducing Net.forward(t, x, s) (split=False, notMNIST=False).

    Returns (y, [gate_fc1, gate_fc2]).
    """
    B = x.shape[0]
    x_flat = x.reshape(B, -1).astype(matmul_dtype)         # torch x.view(B, -1)
    D = x_flat.shape[1]

    w1, b1 = params["fc1.weight"], params["fc1.bias"]       # (U, D), (U,)
    w2, b2 = params["fc2.weight"], params["fc2.bias"]       # (U, U), (U,)
    wl, bl = params["last.weight"], params["last.bias"]     # (C, U), (C,)
    emb1 = params["embedding_fc1.weight"]                    # (T, U)
    emb2 = params["embedding_fc2.weight"]                    # (T, U)

    U = w1.shape[0]
    C = wl.shape[0]

    # HAT gates are x-independent -> compute with plain XLA, keep kernel lean.
    gate_fc1 = jax.nn.sigmoid(s * emb1[t]).astype(jnp.float32)   # (U,)
    gate_fc2 = jax.nn.sigmoid(s * emb2[t]).astype(jnp.float32)   # (U,)

    # Lane-dense output: pad class dim up to a multiple of 128.
    c_pad = pl.cdiv(max(C, 128), 128) * 128
    wl_t = jnp.zeros((U, c_pad), matmul_dtype).at[:, :C].set(wl.T.astype(matmul_dtype))
    bl_p = jnp.zeros((1, c_pad), jnp.float32).at[:, :C].set(bl.reshape(1, C))

    # Pre-transposed (in, out) weights for row-major matmuls.
    w1_t = w1.T.astype(matmul_dtype)                         # (D, U)
    w2_t = w2.T.astype(matmul_dtype)                         # (U, U)
    b1_2d = b1.reshape(1, U).astype(jnp.float32)
    b2_2d = b2.reshape(1, U).astype(jnp.float32)
    g1_2d = gate_fc1.reshape(1, U)
    g2_2d = gate_fc2.reshape(1, U)

    # Batch tiling: tile rows in multiples of 8 sublanes, up to 512 rows/tile.
    if tm is None:
        tm = min(512, pl.cdiv(max(B, 8), 8) * 8)
    b_pad = pl.cdiv(B, tm) * tm
    if b_pad != B:
        x_flat = jnp.pad(x_flat, ((0, b_pad - B), (0, 0)))

    grid = (b_pad // tm,)

    def row_spec(shape):                       # tiled over the batch axis
        return pl.BlockSpec(shape, lambda i: (i, 0))

    def const_spec(shape):                     # VMEM-resident across the grid
        return pl.BlockSpec(shape, lambda i: (0, 0))

    y_padded = pl.pallas_call(
        _hat_mlp_kernel,
        out_shape=jax.ShapeDtypeStruct((b_pad, c_pad), jnp.float32),
        grid=grid,
        in_specs=[
            row_spec((tm, D)),                                 # x tile
            const_spec((D, U)), const_spec((1, U)), const_spec((1, U)),
            const_spec((U, U)), const_spec((1, U)), const_spec((1, U)),
            const_spec((U, c_pad)), const_spec((1, c_pad)),
        ],
        out_specs=row_spec((tm, c_pad)),
        compiler_params=pltpu.CompilerParams(
            dimension_semantics=("parallel",),                 # 2 TCs on v7x
            vmem_limit_bytes=64 * 1024 * 1024,
        ),
    )(x_flat, w1_t, b1_2d, g1_2d, w2_t, b2_2d, g2_2d, wl_t, bl_p)

    y = y_padded[:B, :C]
    return y, [gate_fc1, gate_fc2]


def init_params(key, input_size, taskcla, units):
    """Deterministic parameter init matching the module's shapes."""
    n_channels, size, _ = input_size
    in_dim = n_channels * size * size
    n_tasks = len(taskcla)
    n_classes = taskcla[0][1]          # split=False -> single head

    keys = jax.random.split(key, 8)

    def lin(kw, kb, out_d, in_d):
        bound = 1.0 / jnp.sqrt(in_d)
        w = jax.random.uniform(kw, (out_d, in_d), jnp.float32, -bound, bound)
        b = jax.random.uniform(kb, (out_d,), jnp.float32, -bound, bound)
        return w, b

    w1, b1 = lin(keys[0], keys[1], units, in_dim)
    w2, b2 = lin(keys[2], keys[3], units, units)
    wl, bl = lin(keys[4], keys[5], n_classes, units)
    emb1 = jax.random.normal(keys[6], (n_tasks, units), jnp.float32)
    emb2 = jax.random.normal(keys[7], (n_tasks, units), jnp.float32)

    return {
        "fc1.weight": w1, "fc1.bias": b1,
        "fc2.weight": w2, "fc2.bias": b2,
        "last.weight": wl, "last.bias": bl,
        "embedding_fc1.weight": emb1,
        "embedding_fc2.weight": emb2,
    }


def reference_forward(params, t, x, s=1.0):
    """Pure-JAX reference of the PyTorch forward (eval mode)."""
    B = x.shape[0]
    h = x.reshape(B, -1).astype(jnp.float32)
    g1 = jax.nn.sigmoid(s * params["embedding_fc1.weight"][t])
    g2 = jax.nn.sigmoid(s * params["embedding_fc2.weight"][t])
    h = jnp.maximum(h @ params["fc1.weight"].T + params["fc1.bias"], 0.0) * g1
    h = jnp.maximum(h @ params["fc2.weight"].T + params["fc2.bias"], 0.0) * g2
    y = h @ params["last.weight"].T + params["last.bias"]
    return y, [g1, g2]


if __name__ == "__main__":
    # Small, kernel-friendly sizes consistent with the module:
    #   input_size = (C=4, H=8, W=8)  -> flattened dim 256
    #   units = 128, taskcla = [(0, 10), (1, 10)], split=False, notMNIST=False
    input_size = (4, 8, 8)
    taskcla = [(0, 10), (1, 10)]
    units = 128
    batch = 2
    task = 1
    scale = 1.0

    key = jax.random.PRNGKey(0)
    k_params, k_x, k_x2 = jax.random.split(key, 3)
    params = init_params(k_params, input_size, taskcla, units)
    x = jax.random.normal(k_x, (batch,) + input_size, jnp.float32)  # NCHW

    fwd = jax.jit(functools.partial(hat_mlp_forward, params, task, s=scale))
    y, masks = fwd(x)
    jax.block_until_ready(y)
    jax.block_until_ready(masks)

    # Correctness check against pure-JAX reference (small batch, padded path).
    y_ref, masks_ref = reference_forward(params, task, x, scale)
    assert y.shape == (batch, taskcla[0][1])
    assert jnp.allclose(y, y_ref, atol=1e-4, rtol=1e-4)
    assert jnp.allclose(masks[0], masks_ref[0], atol=1e-6)
    assert jnp.allclose(masks[1], masks_ref[1], atol=1e-6)

    # Second check: exercise the batch grid (>1 tile) + row padding.
    batch2 = 20
    x2 = jax.random.normal(k_x2, (batch2,) + input_size, jnp.float32)
    y2, _ = hat_mlp_forward(params, task, x2, scale, tm=8)
    jax.block_until_ready(y2)
    y2_ref, _ = reference_forward(params, task, x2, scale)
    assert y2.shape == (batch2, taskcla[0][1])
    assert jnp.allclose(y2, y2_ref, atol=1e-4, rtol=1e-4)

    print("KERNEL_OK")
</pallas_src>

<mosaic_0001>
module attributes {stable_mosaic.version = 11 : i64} {
  func.func @_hat_mlp_kernel(%arg0: i32, %arg1: memref<8x256xf32, #tpu.memory_space<vmem>>, %arg2: memref<256x128xf32, #tpu.memory_space<vmem>>, %arg3: memref<1x128xf32, #tpu.memory_space<vmem>>, %arg4: memref<1x128xf32, #tpu.memory_space<vmem>>, %arg5: memref<128x128xf32, #tpu.memory_space<vmem>>, %arg6: memref<1x128xf32, #tpu.memory_space<vmem>>, %arg7: memref<1x128xf32, #tpu.memory_space<vmem>>, %arg8: memref<128x128xf32, #tpu.memory_space<vmem>>, %arg9: memref<1x128xf32, #tpu.memory_space<vmem>>, %arg10: memref<8x128xf32, #tpu.memory_space<vmem>>) attributes {dimension_semantics = [#tpu.dimension_semantics<parallel>], iteration_bounds = array<i64: 1>, scalar_prefetch = 0 : i64, scratch_operands = 0 : i64, tpu.core_type = #tpu.core_type<tc>, window_params = [{transform_indices = @transform_0, window_bounds = array<i64: 8, 256>}, {pipeline_mode = #tpu.pipeline_mode<synchronous>, transform_indices = @transform_1, window_bounds = array<i64: 256, 128>}, {pipeline_mode = #tpu.pipeline_mode<synchronous>, transform_indices = @transform_2, window_bounds = array<i64: 1, 128>}, {pipeline_mode = #tpu.pipeline_mode<synchronous>, transform_indices = @transform_3, window_bounds = array<i64: 1, 128>}, {pipeline_mode = #tpu.pipeline_mode<synchronous>, transform_indices = @transform_4, window_bounds = array<i64: 128, 128>}, {pipeline_mode = #tpu.pipeline_mode<synchronous>, transform_indices = @transform_5, window_bounds = array<i64: 1, 128>}, {pipeline_mode = #tpu.pipeline_mode<synchronous>, transform_indices = @transform_6, window_bounds = array<i64: 1, 128>}, {pipeline_mode = #tpu.pipeline_mode<synchronous>, transform_indices = @transform_7, window_bounds = array<i64: 128, 128>}, {pipeline_mode = #tpu.pipeline_mode<synchronous>, transform_indices = @transform_8, window_bounds = array<i64: 1, 128>}, {transform_indices = @transform_9, window_bounds = array<i64: 8, 128>}]} {
    %c0 = arith.constant 0 : index
    %c0_0 = arith.constant 0 : index
    %0 = vector.load %arg1[%c0, %c0_0] : memref<8x256xf32, #tpu.memory_space<vmem>>, vector<8x256xf32>
    %c0_1 = arith.constant 0 : index
    %c0_2 = arith.constant 0 : index
    %1 = vector.load %arg2[%c0_1, %c0_2] : memref<256x128xf32, #tpu.memory_space<vmem>>, vector<256x128xf32>
    %cst = arith.constant dense<0.000000e+00> : vector<8x128xf32>
    %2 = tpu.matmul %0, %1, %cst {dimension_numbers = #tpu.dot_dimension_numbers<[1], [0], [0], [1], [0, 0, 1, 1], [], []>} : vector<8x256xf32>, vector<256x128xf32>, vector<8x128xf32> -> vector<8x128xf32>
    %c0_3 = arith.constant 0 : index
    %c0_4 = arith.constant 0 : index
    %3 = vector.load %arg3[%c0_3, %c0_4] : memref<1x128xf32, #tpu.memory_space<vmem>>, vector<1x128xf32>
    %4 = vector.broadcast %3 : vector<1x128xf32> to vector<8x128xf32>
    %5 = arith.addf %2, %4 : vector<8x128xf32>
    %cst_5 = arith.constant 0.000000e+00 : f32
    %6 = vector.broadcast %cst_5 : f32 to vector<8x128xf32>
    %7 = arith.maximumf %5, %6 : vector<8x128xf32>
    %c0_6 = arith.constant 0 : index
    %c0_7 = arith.constant 0 : index
    %8 = vector.load %arg4[%c0_6, %c0_7] : memref<1x128xf32, #tpu.memory_space<vmem>>, vector<1x128xf32>
    %9 = vector.broadcast %8 : vector<1x128xf32> to vector<8x128xf32>
    %10 = arith.mulf %7, %9 : vector<8x128xf32>
    %c0_8 = arith.constant 0 : index
    %c0_9 = arith.constant 0 : index
    %11 = vector.load %arg5[%c0_8, %c0_9] : memref<128x128xf32, #tpu.memory_space<vmem>>, vector<128x128xf32>
    %cst_10 = arith.constant dense<0.000000e+00> : vector<8x128xf32>
    %12 = tpu.matmul %10, %11, %cst_10 {dimension_numbers = #tpu.dot_dimension_numbers<[1], [0], [0], [1], [0, 0, 1, 1], [], []>} : vector<8x128xf32>, vector<128x128xf32>, vector<8x128xf32> -> vector<8x128xf32>
    %c0_11 = arith.constant 0 : index
    %c0_12 = arith.constant 0 : index
    %13 = vector.load %arg6[%c0_11, %c0_12] : memref<1x128xf32, #tpu.memory_space<vmem>>, vector<1x128xf32>
    %14 = vector.broadcast %13 : vector<1x128xf32> to vector<8x128xf32>
    %15 = arith.addf %12, %14 : vector<8x128xf32>
    %cst_13 = arith.constant 0.000000e+00 : f32
    %16 = vector.broadcast %cst_13 : f32 to vector<8x128xf32>
    %17 = arith.maximumf %15, %16 : vector<8x128xf32>
    %c0_14 = arith.constant 0 : index
    %c0_15 = arith.constant 0 : index
    %18 = vector.load %arg7[%c0_14, %c0_15] : memref<1x128xf32, #tpu.memory_space<vmem>>, vector<1x128xf32>
    %19 = vector.broadcast %18 : vector<1x128xf32> to vector<8x128xf32>
    %20 = arith.mulf %17, %19 : vector<8x128xf32>
    %c0_16 = arith.constant 0 : index
    %c0_17 = arith.constant 0 : index
    %21 = vector.load %arg8[%c0_16, %c0_17] : memref<128x128xf32, #tpu.memory_space<vmem>>, vector<128x128xf32>
    %cst_18 = arith.constant dense<0.000000e+00> : vector<8x128xf32>
    %22 = tpu.matmul %20, %21, %cst_18 {dimension_numbers = #tpu.dot_dimension_numbers<[1], [0], [0], [1], [0, 0, 1, 1], [], []>} : vector<8x128xf32>, vector<128x128xf32>, vector<8x128xf32> -> vector<8x128xf32>
    %c0_19 = arith.constant 0 : index
    %c0_20 = arith.constant 0 : index
    %23 = vector.load %arg9[%c0_19, %c0_20] : memref<1x128xf32, #tpu.memory_space<vmem>>, vector<1x128xf32>
    %24 = vector.broadcast %23 : vector<1x128xf32> to vector<8x128xf32>
    %25 = arith.addf %22, %24 : vector<8x128xf32>
    %c0_21 = arith.constant 0 : index
    %c0_22 = arith.constant 0 : index
    %26 = vector.load %arg10[%c0_21, %c0_22] : memref<8x128xf32, #tpu.memory_space<vmem>>, vector<8x128xf32>
    tpu.vector_store %arg10[%c0_21, %c0_22], %25 {strides = array<i32>} : memref<8x128xf32, #tpu.memory_space<vmem>>, vector<8x128xf32>,
    return
  }
  func.func @transform_0(%arg0: i32) -> (i32, i32) {
    %c0_i32 = arith.constant 0 : i32
    %c0_i32_0 = arith.constant 0 : i32
    return %arg0, %c0_i32 : i32, i32
  }
  func.func @transform_1(%arg0: i32) -> (i32, i32) {
    %c0_i32 = arith.constant 0 : i32
    %c0_i32_0 = arith.constant 0 : i32
    %c0_i32_1 = arith.constant 0 : i32
    return %c0_i32, %c0_i32_0 : i32, i32
  }
  func.func @transform_2(%arg0: i32) -> (i32, i32) {
    %c0_i32 = arith.constant 0 : i32
    %c0_i32_0 = arith.constant 0 : i32
    %c0_i32_1 = arith.constant 0 : i32
    return %c0_i32, %c0_i32_0 : i32, i32
  }
  func.func @transform_3(%arg0: i32) -> (i32, i32) {
    %c0_i32 = arith.constant 0 : i32
    %c0_i32_0 = arith.constant 0 : i32
    %c0_i32_1 = arith.constant 0 : i32
    return %c0_i32, %c0_i32_0 : i32, i32
  }
  func.func @transform_4(%arg0: i32) -> (i32, i32) {
    %c0_i32 = arith.constant 0 : i32
    %c0_i32_0 = arith.constant 0 : i32
    %c0_i32_1 = arith.constant 0 : i32
    return %c0_i32, %c0_i32_0 : i32, i32
  }
  func.func @transform_5(%arg0: i32) -> (i32, i32) {
    %c0_i32 = arith.constant 0 : i32
    %c0_i32_0 = arith.constant 0 : i32
    %c0_i32_1 = arith.constant 0 : i32
    return %c0_i32, %c0_i32_0 : i32, i32
  }
  func.func @transform_6(%arg0: i32) -> (i32, i32) {
    %c0_i32 = arith.constant 0 : i32
    %c0_i32_0 = arith.constant 0 : i32
    %c0_i32_1 = arith.constant 0 : i32
    return %c0_i32, %c0_i32_0 : i32, i32
  }
  func.func @transform_7(%arg0: i32) -> (i32, i32) {
    %c0_i32 = arith.constant 0 : i32
    %c0_i32_0 = arith.constant 0 : i32
    %c0_i32_1 = arith.constant 0 : i32
    return %c0_i32, %c0_i32_0 : i32, i32
  }
  func.func @transform_8(%arg0: i32) -> (i32, i32) {
    %c0_i32 = arith.constant 0 : i32
    %c0_i32_0 = arith.constant 0 : i32
    %c0_i32_1 = arith.constant 0 : i32
    return %c0_i32, %c0_i32_0 : i32, i32
  }
  func.func @transform_9(%arg0: i32) -> (i32, i32) {
    %c0_i32 = arith.constant 0 : i32
    %c0_i32_0 = arith.constant 0 : i32
    return %arg0, %c0_i32 : i32, i32
  }
}

</mosaic_0001>

<llo_original>
// kernel: hat_mlp_forward.1
$region0: #{hat_mlp_forward.1}
  #allocation0 [shape = 'u32[]', space=smem, size = 0x4, offset = 0x4, fixed_abs, tag = 'smem constant byte address 0x4 - core index']
  #allocation1 [shape = 'u32[72,128]{1,0:T(1,128)}', space=vmem, size = 0x9000, scoped, tag = 'internal scratch']
  %s0 = inlined_call_operand.vmem [shape: f32[8,256], index: 0, kind: input, shape index: {}]
  %s1 = inlined_call_operand.vmem [shape: f32[256,128], index: 1, kind: input, shape index: {}]
  %s2 = inlined_call_operand.vmem [shape: f32[1,128], index: 2, kind: input, shape index: {}]
  %s3 = inlined_call_operand.vmem [shape: f32[1,128], index: 3, kind: input, shape index: {}]
  %s4 = inlined_call_operand.vmem [shape: f32[128,128], index: 4, kind: input, shape index: {}]
  %s5 = inlined_call_operand.vmem [shape: f32[1,128], index: 5, kind: input, shape index: {}]
  %s6 = inlined_call_operand.vmem [shape: f32[1,128], index: 6, kind: input, shape index: {}]
  %s7 = inlined_call_operand.vmem [shape: f32[128,128], index: 7, kind: input, shape index: {}]
  %s8 = inlined_call_operand.vmem [shape: f32[1,128], index: 8, kind: input, shape index: {}]
  %s9 = inlined_call_operand.vmem [shape: f32[8,128], index: 9, kind: output, shape index: {}]
  %s10 = sld [smem:[#allocation0]]
  $region46: #{hat_mlp_forward.1} parent=0
    _
  %s12 = ssub.s32 1, %s10
  %s13 = scalar_select 0, %s12, %s10
  // Predicated region
  $region2: #{hat_mlp_forward.1} parent=0 // pred_check
    _
  $region3: #{hat_mlp_forward.1} parent=0 // pred_check_branch
    %15 = sbr.rel (0) target = $region5
  $region4: #{hat_mlp_forward.1} parent=0 // pred_region
    _
  $region5: #{hat_mlp_forward.1} parent=0 // pred_fallthru
    _
  // Predicated region
  $region6: #{hat_mlp_forward.1} parent=0 // pred_check
    _
  $region7: #{hat_mlp_forward.1} parent=0 // pred_check_branch
    %17 = sbr.rel (0) target = $region9
  $region8: #{hat_mlp_forward.1} parent=0 // pred_region
    _
  $region9: #{hat_mlp_forward.1} parent=0 // pred_fallthru
    _
  // Predicated region
  $region10: #{hat_mlp_forward.1} parent=0 // pred_check
    _
  $region11: #{hat_mlp_forward.1} parent=0 // pred_check_branch
    %19 = sbr.rel (0) target = $region13
  $region12: #{hat_mlp_forward.1} parent=0 // pred_region
    _
  $region13: #{hat_mlp_forward.1} parent=0 // pred_fallthru
    _
  // Predicated region
  $region14: #{hat_mlp_forward.1} parent=0 // pred_check
    _
  $region15: #{hat_mlp_forward.1} parent=0 // pred_check_branch
    %21 = sbr.rel (0) target = $region17
  $region16: #{hat_mlp_forward.1} parent=0 // pred_region
    _
  $region17: #{hat_mlp_forward.1} parent=0 // pred_fallthru
    _
  // Predicated region
  $region18: #{hat_mlp_forward.1} parent=0 // pred_check
    _
  $region19: #{hat_mlp_forward.1} parent=0 // pred_check_branch
    %23 = sbr.rel (0) target = $region21
  $region20: #{hat_mlp_forward.1} parent=0 // pred_region
    _
  $region21: #{hat_mlp_forward.1} parent=0 // pred_fallthru
    _
  // Predicated region
  $region22: #{hat_mlp_forward.1} parent=0 // pred_check
    _
  $region23: #{hat_mlp_forward.1} parent=0 // pred_check_branch
    %25 = sbr.rel (0) target = $region25
  $region24: #{hat_mlp_forward.1} parent=0 // pred_region
    _
  $region25: #{hat_mlp_forward.1} parent=0 // pred_fallthru
    _
  // Predicated region
  $region26: #{hat_mlp_forward.1} parent=0 // pred_check
    _
  $region27: #{hat_mlp_forward.1} parent=0 // pred_check_branch
    %27 = sbr.rel (0) target = $region29
  $region28: #{hat_mlp_forward.1} parent=0 // pred_region
    _
  $region29: #{hat_mlp_forward.1} parent=0 // pred_fallthru
    _
  // Predicated region
  $region30: #{hat_mlp_forward.1} parent=0 // pred_check
    _
  $region31: #{hat_mlp_forward.1} parent=0 // pred_check_branch
    %29 = sbr.rel (0) target = $region33
  $region32: #{hat_mlp_forward.1} parent=0 // pred_region
    _
  $region33: #{hat_mlp_forward.1} parent=0 // pred_fallthru
    _
  // Predicated region
  $region34: #{hat_mlp_forward.1} parent=0 // pred_check
    _
  $region35: #{hat_mlp_forward.1} parent=0 // pred_check_branch
    %31 = sbr.rel (0) target = $region37
  $region36: #{hat_mlp_forward.1} parent=0 // pred_region
    _
  $region37: #{hat_mlp_forward.1} parent=0 // pred_fallthru
    _
  %v32 = vld [vmem:[%s0] sm:$0xff]
  %v33 = vld [vmem:[%s0 + $0x8] sm:$0xff]
  %v34 = vld [vmem:[%s1] sm:$0xff]
  %v35 = vld [vmem:[%s1 + $0x8] sm:$0xff]
  %v36 = vld [vmem:[%s1 + $0x10] sm:$0xff]
  %v37 = vld [vmem:[%s1 + $0x18] sm:$0xff]
  %v38 = vld [vmem:[%s1 + $0x20] sm:$0xff]
  %v39 = vld [vmem:[%s1 + $0x28] sm:$0xff]
  %v40 = vld [vmem:[%s1 + $0x30] sm:$0xff]
  %v41 = vld [vmem:[%s1 + $0x38] sm:$0xff]
  %v42 = vld [vmem:[%s1 + $0x40] sm:$0xff]
  %v43 = vld [vmem:[%s1 + $0x48] sm:$0xff]
  %v44 = vld [vmem:[%s1 + $0x50] sm:$0xff]
  %v45 = vld [vmem:[%s1 + $0x58] sm:$0xff]
  %v46 = vld [vmem:[%s1 + $0x60] sm:$0xff]
  %v47 = vld [vmem:[%s1 + $0x68] sm:$0xff]
  %v48 = vld [vmem:[%s1 + $0x70] sm:$0xff]
  %v49 = vld [vmem:[%s1 + $0x78] sm:$0xff]
  %v50 = vld [vmem:[%s1 + $0x80] sm:$0xff]
  %v51 = vld [vmem:[%s1 + $0x88] sm:$0xff]
  %v52 = vld [vmem:[%s1 + $0x90] sm:$0xff]
  %v53 = vld [vmem:[%s1 + $0x98] sm:$0xff]
  %v54 = vld [vmem:[%s1 + $0xa0] sm:$0xff]
  %v55 = vld [vmem:[%s1 + $0xa8] sm:$0xff]
  %v56 = vld [vmem:[%s1 + $0xb0] sm:$0xff]
  %v57 = vld [vmem:[%s1 + $0xb8] sm:$0xff]
  %v58 = vld [vmem:[%s1 + $0xc0] sm:$0xff]
  %v59 = vld [vmem:[%s1 + $0xc8] sm:$0xff]
  %v60 = vld [vmem:[%s1 + $0xd0] sm:$0xff]
  %v61 = vld [vmem:[%s1 + $0xd8] sm:$0xff]
  %v62 = vld [vmem:[%s1 + $0xe0] sm:$0xff]
  %v63 = vld [vmem:[%s1 + $0xe8] sm:$0xff]
  %v64 = vld [vmem:[%s1 + $0xf0] sm:$0xff]
  %v65 = vld [vmem:[%s1 + $0xf8] sm:$0xff]
  %v66 = vld [vmem:[%s2] sm:$0x1]
  %v68 = vperm.slane %v66, 0
  %70 = vmatpush.msra.mxu0 %v49
  %71 = vmatpush.msra.mxu0 %v48
  %72 = vmatpush.msra.mxu0 %v47
  %73 = vmatpush.msra.mxu0 %v46
  %74 = vmatpush.msra.mxu0 %v45
  %75 = vmatpush.msra.mxu0 %v44
  %76 = vmatpush.msra.mxu0 %v43
  %77 = vmatpush.msra.mxu0 %v42
  %78 = vmatpush.msra.mxu0 %v41
  %79 = vmatpush.msra.mxu0 %v40
  %80 = vmatpush.msra.mxu0 %v39
  %81 = vmatpush.msra.mxu0 %v38
  %82 = vmatpush.msra.mxu0 %v37
  %83 = vmatpush.msra.mxu0 %v36
  %84 = vmatpush.msra.mxu0 %v35
  %85 = vmatpush.msra.mxu0 %v34
  %86 = vmatmul.f32.gmra.mxu0 %v32
  %v87 = vpop.f32.mrf.mxu0
  %v88 = vadd.f32 %v68, %v87
  %89 = vdwg.mxu0
  %90 = vmatpush.msra.mxu0 %v65
  %91 = vmatpush.msra.mxu0 %v64
  %92 = vmatpush.msra.mxu0 %v63
  %93 = vmatpush.msra.mxu0 %v62
  %94 = vmatpush.msra.mxu0 %v61
  %95 = vmatpush.msra.mxu0 %v60
  %96 = vmatpush.msra.mxu0 %v59
  %97 = vmatpush.msra.mxu0 %v58
  %98 = vmatpush.msra.mxu0 %v57
  %99 = vmatpush.msra.mxu0 %v56
  %100 = vmatpush.msra.mxu0 %v55
  %101 = vmatpush.msra.mxu0 %v54
  %102 = vmatpush.msra.mxu0 %v53
  %103 = vmatpush.msra.mxu0 %v52
  %104 = vmatpush.msra.mxu0 %v51
  %105 = vmatpush.msra.mxu0 %v50
  %106 = vmatmul.f32.gmra.mxu0 %v33
  %v107 = vpop.f32.mrf.mxu0
  %v108 = vadd.f32 %v88, %v107
  %109 = vdwg.mxu0
  %v110 = vmax.f32 %v108, 0.0
  %v111 = vld [vmem:[%s3] sm:$0x1]
  %v113 = vperm.slane %v111, 0
  %v115 = vmul.f32 %v110, %v113
  %v116 = vld [vmem:[%s4] sm:$0xff]
  %v117 = vld [vmem:[%s4 + $0x8] sm:$0xff]
  %v118 = vld [vmem:[%s4 + $0x10] sm:$0xff]
  %v119 = vld [vmem:[%s4 + $0x18] sm:$0xff]
  %v120 = vld [vmem:[%s4 + $0x20] sm:$0xff]
  %v121 = vld [vmem:[%s4 + $0x28] sm:$0xff]
  %v122 = vld [vmem:[%s4 + $0x30] sm:$0xff]
  %v123 = vld [vmem:[%s4 + $0x38] sm:$0xff]
  %v124 = vld [vmem:[%s4 + $0x40] sm:$0xff]
  %v125 = vld [vmem:[%s4 + $0x48] sm:$0xff]
  %v126 = vld [vmem:[%s4 + $0x50] sm:$0xff]
  %v127 = vld [vmem:[%s4 + $0x58] sm:$0xff]
  %v128 = vld [vmem:[%s4 + $0x60] sm:$0xff]
  %v129 = vld [vmem:[%s4 + $0x68] sm:$0xff]
  %v130 = vld [vmem:[%s4 + $0x70] sm:$0xff]
  %v131 = vld [vmem:[%s4 + $0x78] sm:$0xff]
  %v132 = vld [vmem:[%s5] sm:$0x1]
  %v134 = vperm.slane %v132, 0
  %136 = vmatpush.msra.mxu0 %v131
  %137 = vmatpush.msra.mxu0 %v130
  %138 = vmatpush.msra.mxu0 %v129
  %139 = vmatpush.msra.mxu0 %v128
  %140 = vmatpush.msra.mxu0 %v127
  %141 = vmatpush.msra.mxu0 %v126
  %142 = vmatpush.msra.mxu0 %v125
  %143 = vmatpush.msra.mxu0 %v124
  %144 = vmatpush.msra.mxu0 %v123
  %145 = vmatpush.msra.mxu0 %v122
  %146 = vmatpush.msra.mxu0 %v121
  %147 = vmatpush.msra.mxu0 %v120
  %148 = vmatpush.msra.mxu0 %v119
  %149 = vmatpush.msra.mxu0 %v118
  %150 = vmatpush.msra.mxu0 %v117
  %151 = vmatpush.msra.mxu0 %v116
  %152 = vmatmul.f32.gmra.mxu0 %v115
  %v153 = vpop.f32.mrf.mxu0
  %v154 = vadd.f32 %v134, %v153
  %155 = vdwg.mxu0
  %v156 = vmax.f32 %v154, 0.0
  %v157 = vld [vmem:[%s6] sm:$0x1]
  %v159 = vperm.slane %v157, 0
  %v161 = vmul.f32 %v156, %v159
  %v162 = vld [vmem:[%s7] sm:$0xff]
  %v163 = vld [vmem:[%s7 + $0x8] sm:$0xff]
  %v164 = vld [vmem:[%s7 + $0x10] sm:$0xff]
  %v165 = vld [vmem:[%s7 + $0x18] sm:$0xff]
  %v166 = vld [vmem:[%s7 + $0x20] sm:$0xff]
  %v167 = vld [vmem:[%s7 + $0x28] sm:$0xff]
  %v168 = vld [vmem:[%s7 + $0x30] sm:$0xff]
  %v169 = vld [vmem:[%s7 + $0x38] sm:$0xff]
  %v170 = vld [vmem:[%s7 + $0x40] sm:$0xff]
  %v171 = vld [vmem:[%s7 + $0x48] sm:$0xff]
  %v172 = vld [vmem:[%s7 + $0x50] sm:$0xff]
  %v173 = vld [vmem:[%s7 + $0x58] sm:$0xff]
  %v174 = vld [vmem:[%s7 + $0x60] sm:$0xff]
  %v175 = vld [vmem:[%s7 + $0x68] sm:$0xff]
  %v176 = vld [vmem:[%s7 + $0x70] sm:$0xff]
  %v177 = vld [vmem:[%s7 + $0x78] sm:$0xff]
  %v178 = vld [vmem:[%s8] sm:$0x1]
  %v180 = vperm.slane %v178, 0
  %182 = vmatpush.msra.mxu0 %v177
  %183 = vmatpush.msra.mxu0 %v176
  %184 = vmatpush.msra.mxu0 %v175
  %185 = vmatpush.msra.mxu0 %v174
  %186 = vmatpush.msra.mxu0 %v173
  %187 = vmatpush.msra.mxu0 %v172
  %188 = vmatpush.msra.mxu0 %v171
  %189 = vmatpush.msra.mxu0 %v170
  %190 = vmatpush.msra.mxu0 %v169
  %191 = vmatpush.msra.mxu0 %v168
  %192 = vmatpush.msra.mxu0 %v167
  %193 = vmatpush.msra.mxu0 %v166
  %194 = vmatpush.msra.mxu0 %v165
  %195 = vmatpush.msra.mxu0 %v164
  %196 = vmatpush.msra.mxu0 %v163
  %197 = vmatpush.msra.mxu0 %v162
  %198 = vmatmul.f32.gmra.mxu0 %v161
  %v199 = vpop.f32.mrf.mxu0
  %v200 = vadd.f32 %v180, %v199
  %201 = vdwg.mxu0
  %202 = vst [vmem:[%s9] sm:$0xff] %v200
  // Predicated region
  $region38: #{hat_mlp_forward.1} parent=0 // pred_check
    _
  $region39: #{hat_mlp_forward.1} parent=0 // pred_check_branch
    %204 = sbr.rel (0) target = $region41
  $region40: #{hat_mlp_forward.1} parent=0 // pred_region
    _
  $region41: #{hat_mlp_forward.1} parent=0 // pred_fallthru
    _
  // Predicated region
  $region42: #{hat_mlp_forward.1} parent=0 // pred_check
    _
  $region43: #{hat_mlp_forward.1} parent=0 // pred_check_branch
    %206 = sbr.rel (0) target = $region45
  $region44: #{hat_mlp_forward.1} parent=0 // pred_region
    _
  $region45: #{hat_mlp_forward.1} parent=0 // pred_fallthru
    _

</llo_original>
